<compile_context>
chip_gen: v7x
topology: tpu7x:2x2x1
jax: 0.10.0
libtpu: 0.0.40
codegen_flags: <defaults>
</compile_context>

<pallas_src>
import functools
import math

import numpy as np
import jax
import jax.numpy as jnp
from jax.experimental import pallas as pl
from jax.experimental.pallas import tpu as pltpu

# ----------------------- module hyper-parameters (defaults) -------------------
SR, N_FFT, N_MELS = 32000, 2048, 64
FMIN, FMAX = 50.0, 14000.0
TO_DB = True
REF, AMIN, TOP_DB = 1.0, 1e-10, 80.0
N_FREQ = N_FFT // 2 + 1  # 1025
LOG10_REF = float(np.log10(max(AMIN, REF)))


# --------------------- deterministic slaney mel filterbank --------------------
# (reproduces librosa.filters.mel(sr, n_fft, n_mels, fmin, fmax) defaults:
#  htk=False, norm='slaney'); built host-side in NumPy — it is a module
#  parameter, not kernel work.
def _hz_to_mel(f):
    f = np.asarray(f, dtype=np.float64)
    f_sp = 200.0 / 3
    mels = f / f_sp
    min_log_hz = 1000.0
    min_log_mel = min_log_hz / f_sp
    logstep = math.log(6.4) / 27.0
    return np.where(f >= min_log_hz,
                    min_log_mel + np.log(np.maximum(f, 1e-20) / min_log_hz) / logstep,
                    mels)


def _mel_to_hz(m):
    m = np.asarray(m, dtype=np.float64)
    f_sp = 200.0 / 3
    freqs = f_sp * m
    min_log_hz = 1000.0
    min_log_mel = min_log_hz / f_sp
    logstep = math.log(6.4) / 27.0
    return np.where(m >= min_log_mel,
                    min_log_hz * np.exp(logstep * (m - min_log_mel)),
                    freqs)


def make_mel_filterbank(sr, n_fft, n_mels, fmin, fmax):
    n_freq = n_fft // 2 + 1
    fftfreqs = np.linspace(0.0, sr / 2.0, n_freq)
    mel_pts = _mel_to_hz(np.linspace(_hz_to_mel(fmin), _hz_to_mel(fmax), n_mels + 2))
    fdiff = np.diff(mel_pts)
    ramps = mel_pts[:, None] - fftfreqs[None, :]
    weights = np.zeros((n_mels, n_freq), dtype=np.float64)
    for i in range(n_mels):
        lower = -ramps[i] / fdiff[i]
        upper = ramps[i + 2] / fdiff[i + 1]
        weights[i] = np.maximum(0.0, np.minimum(lower, upper))
    enorm = 2.0 / (mel_pts[2: n_mels + 2] - mel_pts[:n_mels])
    weights *= enorm[:, None]
    return weights.astype(np.float32).T  # (n_freq, n_mels) — already transposed (.T)


def _round_up(n, m):
    return ((n + m - 1) // m) * m


def _cdiv(a, b):
    return -(-a // b)


@functools.lru_cache(maxsize=1)
def _device_tile_config():
    """(row-tile cap, explicit vmem_limit_bytes or None) chosen from physical VMEM."""
    try:
        vmem = int(pltpu.get_tpu_info().vmem_capacity_bytes)
    except Exception:
        vmem = 0
    if vmem >= (96 << 20):
        # v5e / v6e: 128 MiB physical VMEM -> tm=2048 (~22 MiB live) + explicit limit.
        return 2048, 64 << 20
    # v7x (64 MiB physical) or unknown: tm=1024 (~12 MiB) under the 32 MiB default.
    return 1024, None


# ------------------------------- Pallas kernels --------------------------------
def mel_logpow_kernel(x_ref, mel_ref, logp_ref, pmax_ref, *, m_total, tm):
    """MXU matmul + power->dB conversion + masked per-tile partial max."""
    power = jnp.dot(x_ref[...], mel_ref[...], preferred_element_type=jnp.float32)
    log_power = 10.0 * (jnp.log10(jnp.maximum(power, AMIN)) - LOG10_REF)
    logp_ref[...] = log_power
    # Ragged last tile: rows >= m_total hold garbage (possibly NaN) input; mask
    # them with -inf before the reduction so they cannot move the global max.
    row = (pl.program_id(0) * tm
           + jax.lax.broadcasted_iota(jnp.int32, log_power.shape, 0))
    tile_max = jnp.max(jnp.where(row < m_total, log_power, -jnp.inf))
    # One full (8,128) vreg per tile -> unmasked, lane-dense store.
    pmax_ref[...] = jnp.full((8, 128), tile_max, dtype=jnp.float32)


def mel_power_kernel(x_ref, mel_ref, out_ref):
    """Plain mel matmul (to_db=False path)."""
    out_ref[...] = jnp.dot(x_ref[...], mel_ref[...],
                           preferred_element_type=jnp.float32)


# --------------------------------- wrapper -------------------------------------
def mel_filter_bank_forward(x, mel, *, to_db=TO_DB, tm=None):
    """x: (..., F) float32/bf16, mel: (F, n_mels) float32 -> (..., n_mels) float32."""
    orig_shape = x.shape
    F = orig_shape[-1]
    n_mels = mel.shape[1]

    # bf16 inputs are consumed as-is (halves the dominant HBM read); the matmul
    # still accumulates in f32.  Everything else is computed in f32.
    if x.dtype == jnp.bfloat16:
        x2d = x.reshape(-1, F)
        mel_in = mel.astype(jnp.bfloat16)
    else:
        x2d = x.reshape(-1, F).astype(jnp.float32)
        mel_in = mel.astype(jnp.float32)
    M = x2d.shape[0]

    tm_cap, vmem_limit = _device_tile_config()
    if tm is not None:
        tm_cap = tm
    # No padding: grid = cdiv(M, tm_eff), Pallas handles the ragged last tile.
    # Keep >=2 row tiles whenever M > 8 so the "parallel" axis can span both
    # v7x TensorCores (harmless one extra grid step on v5e/v6e).
    tm_eff = min(tm_cap, max(8, _round_up(_cdiv(M, 2), 8)))
    num_tiles = _cdiv(M, tm_eff)
    grid = (num_tiles,)

    x_spec = pl.BlockSpec((tm_eff, F), lambda i: (i, 0))        # row tile, full K
    mel_spec = pl.BlockSpec((F, n_mels), lambda i: (0, 0))      # whole mel resident
    out_spec = pl.BlockSpec((tm_eff, n_mels), lambda i: (i, 0))

    compiler_params = pltpu.CompilerParams(
        dimension_semantics=("parallel",),
        vmem_limit_bytes=vmem_limit,
    )
    cost = pl.CostEstimate(
        flops=2 * M * F * n_mels,
        transcendentals=(M * n_mels) if to_db else 0,
        bytes_accessed=int(x2d.dtype.itemsize) * M * F + 4 * (M * n_mels + F * n_mels),
    )

    if not to_db:
        power = pl.pallas_call(
            mel_power_kernel,
            out_shape=jax.ShapeDtypeStruct((M, n_mels), jnp.float32),
            grid_spec=pltpu.PrefetchScalarGridSpec(
                num_scalar_prefetch=0, grid=grid,
                in_specs=[x_spec, mel_spec],
                out_specs=out_spec,
            ),
            compiler_params=compiler_params,
            cost_estimate=cost,
        )(x2d, mel_in)
        return power.reshape(*orig_shape[:-1], n_mels)

    # --- single Pallas pass: matmul + log, plus per-tile masked partial maxes ---
    kernel = functools.partial(mel_logpow_kernel, m_total=M, tm=tm_eff)
    log_power, pmax = pl.pallas_call(
        kernel,
        out_shape=(
            jax.ShapeDtypeStruct((M, n_mels), jnp.float32),
            jax.ShapeDtypeStruct((num_tiles * 8, 128), jnp.float32),
        ),
        grid_spec=pltpu.PrefetchScalarGridSpec(
            num_scalar_prefetch=0, grid=grid,
            in_specs=[x_spec, mel_spec],
            out_specs=[out_spec, pl.BlockSpec((8, 128), lambda i: (i, 0))],
        ),
        compiler_params=compiler_params,
        cost_estimate=cost,
    )(x2d, mel_in)

    # Tiny partial-max reduction + final clamp stay in XLA: the clamp fuses with
    # the output reshape, so there is no second kernel launch or extra pass.
    floor = jnp.max(pmax) - TOP_DB
    out2d = jnp.maximum(log_power, floor)
    return out2d.reshape(*orig_shape[:-1], n_mels)


# -------------------------------- reference ------------------------------------
def reference_forward(x, mel):
    power = jnp.matmul(x, mel)
    log_power = 10.0 * (jnp.log10(jnp.maximum(power, AMIN)) - LOG10_REF)
    floor = jnp.max(log_power) - TOP_DB
    return jnp.maximum(log_power, floor)


if __name__ == "__main__":
    key = jax.random.PRNGKey(0)
    # M = B*C*T = 120 rows -> two 64-row tiles with a ragged tail, exercising the
    # no-pad / masked-pmax path.
    B, C, T = 2, 1, 60
    # spectrogram power values are non-negative; square a normal draw
    x = jax.random.normal(key, (B, C, T, N_FREQ), dtype=jnp.float32) ** 2

    mel = jnp.asarray(make_mel_filterbank(SR, N_FFT, N_MELS, FMIN, FMAX))  # (1025, 64)

    fwd = jax.jit(mel_filter_bank_forward)
    out = jax.block_until_ready(fwd(x, mel))

    ref = reference_forward(x, mel)
    assert out.shape == (B, C, T, N_MELS)
    assert jnp.allclose(out, ref, atol=1e-3, rtol=1e-3), "mismatch vs reference (to_db)"

    # to_db=False path
    fwd_nodb = jax.jit(lambda xx, mm: mel_filter_bank_forward(xx, mm, to_db=False))
    out_nodb = jax.block_until_ready(fwd_nodb(x, mel))
    assert jnp.allclose(out_nodb, jnp.matmul(x, mel), atol=1e-3, rtol=1e-3), \
        "mismatch vs reference (no db)"

    print("KERNEL_OK")
</pallas_src>

<mosaic_0001>
module attributes {stable_mosaic.version = 11 : i64} {
  func.func @mel_logpow_kernel(%arg0: i32, %arg1: memref<64x1025xf32, #tpu.memory_space<vmem>>, %arg2: memref<1025x64xf32, #tpu.memory_space<vmem>>, %arg3: memref<64x64xf32, #tpu.memory_space<vmem>>, %arg4: memref<8x128xf32, #tpu.memory_space<vmem>>) attributes {dimension_semantics = [#tpu.dimension_semantics<parallel>], iteration_bounds = array<i64: 2>, scalar_prefetch = 0 : i64, scratch_operands = 0 : i64, tpu.core_type = #tpu.core_type<tc>, window_params = [{transform_indices = @transform_0, window_bounds = array<i64: 64, 1025>}, {pipeline_mode = #tpu.pipeline_mode<synchronous>, transform_indices = @transform_1, window_bounds = array<i64: 1025, 64>}, {transform_indices = @transform_2, window_bounds = array<i64: 64, 64>}, {transform_indices = @transform_3, window_bounds = array<i64: 8, 128>}]} {
    %c0 = arith.constant 0 : index
    %c0_0 = arith.constant 0 : index
    %0 = vector.load %arg1[%c0, %c0_0] : memref<64x1025xf32, #tpu.memory_space<vmem>>, vector<64x1025xf32>
    %c0_1 = arith.constant 0 : index
    %c0_2 = arith.constant 0 : index
    %1 = vector.load %arg2[%c0_1, %c0_2] : memref<1025x64xf32, #tpu.memory_space<vmem>>, vector<1025x64xf32>
    %cst = arith.constant dense<0.000000e+00> : vector<64x64xf32>
    %2 = tpu.matmul %0, %1, %cst {dimension_numbers = #tpu.dot_dimension_numbers<[1], [0], [0], [1], [0, 0, 1, 1], [], []>} : vector<64x1025xf32>, vector<1025x64xf32>, vector<64x64xf32> -> vector<64x64xf32>
    %cst_3 = arith.constant 1.000000e-10 : f32
    %3 = vector.broadcast %cst_3 : f32 to vector<64x64xf32>
    %4 = arith.maximumf %2, %3 : vector<64x64xf32>
    %5 = math.log %4 : vector<64x64xf32>
    %cst_4 = arith.constant 0.434294492 : f32
    %6 = vector.broadcast %cst_4 : f32 to vector<64x64xf32>
    %7 = arith.mulf %5, %6 : vector<64x64xf32>
    %cst_5 = arith.constant 0.000000e+00 : f32
    %8 = vector.broadcast %cst_5 : f32 to vector<64x64xf32>
    %9 = arith.subf %7, %8 : vector<64x64xf32>
    %cst_6 = arith.constant 1.000000e+01 : f32
    %10 = vector.broadcast %cst_6 : f32 to vector<64x64xf32>
    %11 = arith.mulf %10, %9 : vector<64x64xf32>
    %c0_7 = arith.constant 0 : index
    %c0_8 = arith.constant 0 : index
    %12 = vector.load %arg3[%c0_7, %c0_8] : memref<64x64xf32, #tpu.memory_space<vmem>>, vector<64x64xf32>
    tpu.vector_store %arg3[%c0_7, %c0_8], %11 {strides = array<i32>} : memref<64x64xf32, #tpu.memory_space<vmem>>, vector<64x64xf32>,
    %c64_i32 = arith.constant 64 : i32
    %13 = arith.muli %arg0, %c64_i32 : i32
    %14 = tpu.iota {dimensions = array<i32: 0>} : vector<64x64xi32>
    %15 = vector.broadcast %13 : i32 to vector<64x64xi32>
    %16 = arith.addi %15, %14 : vector<64x64xi32>
    %c120_i32 = arith.constant 120 : i32
    %17 = vector.broadcast %c120_i32 : i32 to vector<64x64xi32>
    %18 = arith.cmpi slt, %16, %17 : vector<64x64xi32>
    %cst_9 = arith.constant 0xFF800000 : f32
    %19 = vector.broadcast %cst_9 : f32 to vector<64x64xf32>
    %20 = arith.select %18, %11, %19 : vector<64x64xi1>, vector<64x64xf32>
    %21 = vector.shape_cast %20 : vector<64x64xf32> to vector<1x64x64xf32>
    %cst_10 = arith.constant dense<0xFF800000> : vector<1xf32>
    %22 = vector.multi_reduction <maximumf>, %21, %cst_10 [1, 2] : vector<1x64x64xf32> to vector<1xf32>
    %23 = vector.shape_cast %22 : vector<1xf32> to vector<1x1x1xf32>
    %24 = vector.extract %23[0, 0, 0] : f32 from vector<1x1x1xf32>
    %25 = vector.broadcast %24 : f32 to vector<8x128xf32>
    %c0_11 = arith.constant 0 : index
    %c0_12 = arith.constant 0 : index
    %26 = vector.load %arg4[%c0_11, %c0_12] : memref<8x128xf32, #tpu.memory_space<vmem>>, vector<8x128xf32>
    tpu.vector_store %arg4[%c0_11, %c0_12], %25 {strides = array<i32>} : memref<8x128xf32, #tpu.memory_space<vmem>>, vector<8x128xf32>,
    return
  }
  func.func @transform_0(%arg0: i32) -> (i32, i32) {
    %c0_i32 = arith.constant 0 : i32
    %c0_i32_0 = arith.constant 0 : i32
    return %arg0, %c0_i32 : i32, i32
  }
  func.func @transform_1(%arg0: i32) -> (i32, i32) {
    %c0_i32 = arith.constant 0 : i32
    %c0_i32_0 = arith.constant 0 : i32
    %c0_i32_1 = arith.constant 0 : i32
    return %c0_i32, %c0_i32_0 : i32, i32
  }
  func.func @transform_2(%arg0: i32) -> (i32, i32) {
    %c0_i32 = arith.constant 0 : i32
    %c0_i32_0 = arith.constant 0 : i32
    return %arg0, %c0_i32 : i32, i32
  }
  func.func @transform_3(%arg0: i32) -> (i32, i32) {
    %c0_i32 = arith.constant 0 : i32
    %c0_i32_0 = arith.constant 0 : i32
    return %arg0, %c0_i32 : i32, i32
  }
}

</mosaic_0001>

<llo_original>
// kernel: mel_filter_bank_forward.1
$region0: #{mel_filter_bank_forward.1}
  #allocation0 [shape = 'u32[]', space=smem, size = 0x4, offset = 0x4, fixed_abs, tag = 'smem constant byte address 0x4 - core index']
  #allocation1 [shape = 'u32[144,128]{1,0:T(1,128)}', space=vmem, size = 0x12000, scoped, tag = 'internal scratch']
  %s0 = inlined_call_operand.vmem [shape: f32[120,1025], index: 0, kind: input, shape index: {}]
  %s1 = inlined_call_operand.vmem [shape: f32[1025,64], index: 1, kind: input, shape index: {}]
  %s2 = inlined_call_operand.vmem [shape: f32[120,64], index: 2, kind: output, shape index: {0}]
  %s3 = inlined_call_operand.vmem [shape: f32[16,128], index: 3, kind: output, shape index: {1}]
  %4 = xla_tuple %s2, %s3
  %s5 = sld [smem:[#allocation0]]
  $region97: #{mel_filter_bank_forward.1} parent=0
    _
  %s7 = ssub.s32 1, %s5
  %s8 = scalar_select 0, %s7, %s5
  $region1: #{mel_filter_bank_forward.1} parent=0
    #allocation2 [shape = 'u8[65536]{0}', space=vmem, size = 0x10000, scoped, tag = 'output window, operand 0']
    loop: start=0, step=1, limit=4
    $region2: #{mel_filter_bank_forward.1} parent=1 // loop_pre_header
      _
    $region3: #{mel_filter_bank_forward.1} parent=1 // loop_header
      %s10 = sphi 0, %s14
      %p11 = scmp.ge.s32.totalorder %s10, 4
      %s20 = sphi 0, %s22
      %s23 = sphi 0, %s20
      %s24 = sphi 0, %s23
      %s40 = sphi 0, %s24
      %s44 = sphi 0, %s44
      %s46 = sphi 0, %s44
      %s47 = sphi 0, %s46
      %s61 = sphi 0, %s47
      %s67 = sphi 0, %s69
      %s70 = sphi 0, %s67
      %s71 = sphi 0, %s70
      %s87 = sphi 0, %s71
      %s93 = sphi 0, %s95
      %s96 = sphi 0, %s93
      %s97 = sphi 0, %s96
      %s113 = sphi 0, %s97
    $region4: #{mel_filter_bank_forward.1} parent=1 // loop_header_branch
      %13 = sbr.rel (%p11) target = $region8
    $region5: #{mel_filter_bank_forward.1} parent=1 // loop_body
      %s15 = ssub.s32 %s10, 1
      %s16 = ssub.s32 %s10, 2
      %s17 = sadd.s32 %s10, 1
      %s18 = ssub.s32 %s10, %s17
      %p19 = scmp.eq.s32.totalorder %s18, 0
      %s21 = sadd.s32 %s20, 1
      %s22 = scalar_select %p19, %s20, %s21
      %p25 = pneg %p19
      %p26 = scmp.eq.s32.totalorder %s10, 1
      %p27 = por %p25, %p26
      %p28 = scmp.ne.s32.totalorder %s20, %s23
      %p29 = scmp.eq.s32.totalorder %s10, 0
      %p30 = por %p28, %p29
      %p31 = scmp.ne.s32.totalorder %s20, %s23
      %p32 = scmp.eq.s32.totalorder %s15, 1
      %p33 = por %p31, %p32
      %p34 = scmp.ne.s32.totalorder %s23, %s24
      %p35 = scmp.eq.s32.totalorder %s15, 0
      %p36 = por %p34, %p35
      %p37 = scmp.ne.s32.totalorder %s23, %s24
      %p38 = scmp.eq.s32.totalorder %s16, 1
      %p39 = por %p37, %p38
      %p41 = scmp.ne.s32.totalorder %s24, %s40
      %p42 = scmp.eq.s32.totalorder %s16, 0
      %p43 = por %p41, %p42
      %s45 = sadd.s32 %s44, 1
      %p48 = scmp.eq.s32.totalorder %s10, 1
      %p49 = scmp.ne.s32.totalorder %s44, %s46
      %p50 = scmp.eq.s32.totalorder %s10, 0
      %p51 = por %p49, %p50
      %p52 = scmp.ne.s32.totalorder %s44, %s46
      %p53 = scmp.eq.s32.totalorder %s15, 1
      %p54 = por %p52, %p53
      %p55 = scmp.ne.s32.totalorder %s46, %s47
      %p56 = scmp.eq.s32.totalorder %s15, 0
      %p57 = por %p55, %p56
      %p58 = scmp.ne.s32.totalorder %s46, %s47
      %p59 = scmp.eq.s32.totalorder %s16, 1
      %p60 = por %p58, %p59
      %p62 = scmp.ne.s32.totalorder %s47, %s61
      %p63 = scmp.eq.s32.totalorder %s16, 0
      %p64 = por %p62, %p63
      %s65 = ssub.s32 %s10, %s17
      %p66 = scmp.eq.s32.totalorder %s65, 0
      %s68 = sadd.s32 %s67, 1
      %s69 = scalar_select %p66, %s67, %s68
      %p72 = pneg %p66
      %p73 = scmp.eq.s32.totalorder %s10, 1
      %p74 = por %p72, %p73
      %p75 = scmp.ne.s32.totalorder %s67, %s70
      %p76 = scmp.eq.s32.totalorder %s10, 0
      %p77 = por %p75, %p76
      %p78 = scmp.ne.s32.totalorder %s67, %s70
      %p79 = scmp.eq.s32.totalorder %s15, 1
      %p80 = por %p78, %p79
      %p81 = scmp.ne.s32.totalorder %s70, %s71
      %p82 = scmp.eq.s32.totalorder %s15, 0
      %p83 = por %p81, %p82
      %p84 = scmp.ne.s32.totalorder %s70, %s71
      %p85 = scmp.eq.s32.totalorder %s16, 1
      %p86 = por %p84, %p85
      %p88 = scmp.ne.s32.totalorder %s71, %s87
      %p89 = scmp.eq.s32.totalorder %s16, 0
      %p90 = por %p88, %p89
      %s91 = ssub.s32 %s10, %s17
      %p92 = scmp.eq.s32.totalorder %s91, 0
      %s94 = sadd.s32 %s93, 1
      %s95 = scalar_select %p92, %s93, %s94
      %p98 = pneg %p92
      %p99 = scmp.eq.s32.totalorder %s10, 1
      %p100 = por %p98, %p99
      %p101 = scmp.ne.s32.totalorder %s93, %s96
      %p102 = scmp.eq.s32.totalorder %s10, 0
      %p103 = por %p101, %p102
      %p104 = scmp.ne.s32.totalorder %s93, %s96
      %p105 = scmp.eq.s32.totalorder %s15, 1
      %p106 = por %p104, %p105
      %p107 = scmp.ne.s32.totalorder %s96, %s97
      %p108 = scmp.eq.s32.totalorder %s15, 0
      %p109 = por %p107, %p108
      %p110 = scmp.ne.s32.totalorder %s96, %s97
      %p111 = scmp.eq.s32.totalorder %s16, 1
      %p112 = por %p110, %p111
      %p114 = scmp.ne.s32.totalorder %s97, %s113
      %p115 = scmp.eq.s32.totalorder %s16, 0
      %p116 = por %p114, %p115
      %p117 = scmp.le.s32.totalorder 1, %s10
      %p118 = scmp.lt.s32.totalorder %s10, 3
      %p119 = pnand %p117, %p118
      %p120 = pneg %p119
      // Predicated region
      $region9: #{mel_filter_bank_forward.1} parent=5 // pred_check
        _
      $region10: #{mel_filter_bank_forward.1} parent=5 // pred_check_branch
        %122 = sbr.rel (%p119) target = $region12
      $region11: #{mel_filter_bank_forward.1} parent=5 // pred_region
        %s123 = ssub.s32 %s10, 1
        // Predicated region
        $region13: #{mel_filter_bank_forward.1} parent=11 // pred_check
          %p124 = pneg %p57
        $region14: #{mel_filter_bank_forward.1} parent=11 // pred_check_branch
          %126 = sbr.rel (%p124) target = $region16
        $region15: #{mel_filter_bank_forward.1} parent=11 // pred_region
          _
        $region16: #{mel_filter_bank_forward.1} parent=11 // pred_fallthru
          _
      $region12: #{mel_filter_bank_forward.1} parent=5 // pred_fallthru
        _
      %p127 = scmp.lt.s32.totalorder %s10, 2
      // Predicated region
      $region17: #{mel_filter_bank_forward.1} parent=5 // pred_check
        %p128 = pneg %p127
      $region18: #{mel_filter_bank_forward.1} parent=5 // pred_check_branch
        %130 = sbr.rel (%p128) target = $region20
      $region19: #{mel_filter_bank_forward.1} parent=5 // pred_region
        // Predicated region
        $region21: #{mel_filter_bank_forward.1} parent=19 // pred_check
          %p131 = pneg %p30
        $region22: #{mel_filter_bank_forward.1} parent=19 // pred_check_branch
          %133 = sbr.rel (%p131) target = $region24
        $region23: #{mel_filter_bank_forward.1} parent=19 // pred_region
          %s134 = smul.u32 8, %s10
          %s135 = ssub.s32 15, %s134
          %p136 = scmp.lt.s32.totalorder %s135, 8
          %s137 = scalar_select %p136, %s135, 8
          %s138 = smul.u32 128, %s137
          %s139 = smul.u32 %s138, 9
          %p140 = scmp.lt.s32.totalorder %s134, 14
          %s141 = scalar_select %p140, %s134, 14
          %s142 = smul.addr %s141, 9
          %s143 = smul.addr %s142, 8
          %s144 = scalar_lea.vmem %s0, %s143
          %s145 = smul.u32 8, %s10
          %s146 = ssub.s32 15, %s145
          %p147 = scmp.lt.s32.totalorder %s146, 8
          %s148 = scalar_select %p147, %s146, 8
          %s149 = smul.u32 128, %s148
          %s150 = smul.u32 %s149, 9
        $region24: #{mel_filter_bank_forward.1} parent=19 // pred_fallthru
          _
      $region20: #{mel_filter_bank_forward.1} parent=5 // pred_fallthru
        _
      %p151 = scmp.le.s32.totalorder 1, %s10
      %p152 = scmp.lt.s32.totalorder %s10, 3
      %p153 = pnand %p151, %p152
      %p154 = pneg %p153
      // Predicated region
      $region25: #{mel_filter_bank_forward.1} parent=5 // pred_check
        _
      $region26: #{mel_filter_bank_forward.1} parent=5 // pred_check_branch
        %156 = sbr.rel (%p153) target = $region28
      $region27: #{mel_filter_bank_forward.1} parent=5 // pred_region
        %s157 = ssub.s32 %s10, 1
        %s158 = smul.u32 8, %s15
        %s159 = ssub.s32 15, %s158
        %p160 = scmp.lt.s32.totalorder %s159, 8
        %s161 = scalar_select %p160, %s159, 8
        %s162 = smul.u32 128, %s161
        %s163 = smul.u32 %s162, 9
        %p164 = scmp.lt.s32.totalorder %s158, 14
        %s165 = scalar_select %p164, %s158, 14
        %s166 = smul.addr %s165, 9
        %s167 = smul.addr %s166, 8
        %s168 = scalar_lea.vmem %s0, %s167
        %p169 = pneg %p36
        %p170 = pneg %p33
        %p171 = pneg %p57
        %p172 = pneg %p54
        %p173 = pneg %p83
        %p174 = pneg %p80
        %s175 = sand.u32 %s70, 1
        %s176 = sand.u32 %s70, 1
        %s177 = smul.addr %s176, 64
        %s178 = scalar_lea.vmem [#allocation2], %s177
        %p179 = pneg %p109
        %p180 = pneg %p106
        %p181 = scmp.lt.s32.totalorder %s15, 1
        %s182 = scalar_select %p181, %s15, 1
        %s183 = smul.addr %s182, 8
        %s184 = scalar_lea.vmem %s3, %s183
        %s185 = smul.u32 8, %s15
        %s186 = ssub.s32 15, %s185
        %p187 = scmp.lt.s32.totalorder %s186, 8
        %s188 = scalar_select %p187, %s186, 8
        %s189 = smul.u32 128, %s188
        %s190 = smul.u32 %s189, 9
        %p191 = scmp.lt.s32.totalorder %s185, 14
        %s192 = scalar_select %p191, %s185, 14
        %s193 = smul.addr %s192, 9
        %s194 = smul.addr %s193, 8
        %s195 = scalar_lea.vmem %s0, %s194
        %s196 = smul.u32 8, %s15
        %s197 = ssub.s32 15, %s196
        %p198 = scmp.lt.s32.totalorder %s197, 8
        %s199 = scalar_select %p198, %s197, 8
        %s200 = smul.u32 128, %s199
        %s201 = smul.u32 %s200, 9
        %s202 = smul.u32 8, %s15
        %s203 = ssub.s32 15, %s202
        %p204 = scmp.lt.s32.totalorder %s203, 8
        %s205 = scalar_select %p204, %s203, 8
        %s206 = smul.u32 128, %s205
        %p207 = scmp.lt.s32.totalorder %s15, 1
        %s208 = scalar_select %p207, %s15, 1
        %s209 = smul.addr %s208, 8
        %s210 = scalar_lea.vmem %s3, %s209
        %v211 = vld [vmem:[%s195] sm:$0xff]
        %v212 = vld [vmem:[%s195 + $0x8] sm:$0xff]
        %v213 = vld [vmem:[%s195 + $0x10] sm:$0xff]
        %v214 = vld [vmem:[%s195 + $0x18] sm:$0xff]
        %v215 = vld [vmem:[%s195 + $0x20] sm:$0xff]
        %v216 = vld [vmem:[%s195 + $0x28] sm:$0xff]
        %v217 = vld [vmem:[%s195 + $0x30] sm:$0xff]
        %v218 = vld [vmem:[%s195 + $0x38] sm:$0xff]
        %v219 = vld [vmem:[%s195 + $0x40] sm:$0xff]
        %v220 = vld [vmem:[%s195 + $0x48] sm:$0xff]
        %v221 = vld [vmem:[%s195 + $0x50] sm:$0xff]
        %v222 = vld [vmem:[%s195 + $0x58] sm:$0xff]
        %v223 = vld [vmem:[%s195 + $0x60] sm:$0xff]
        %v224 = vld [vmem:[%s195 + $0x68] sm:$0xff]
        %v225 = vld [vmem:[%s195 + $0x70] sm:$0xff]
        %v226 = vld [vmem:[%s195 + $0x78] sm:$0xff]
        %v227 = vld [vmem:[%s195 + $0x80] sm:$0xff]
        %v228 = vld [vmem:[%s195 + $0x88] sm:$0xff]
        %v229 = vld [vmem:[%s195 + $0x90] sm:$0xff]
        %v230 = vld [vmem:[%s195 + $0x98] sm:$0xff]
        %v231 = vld [vmem:[%s195 + $0xa0] sm:$0xff]
        %v232 = vld [vmem:[%s195 + $0xa8] sm:$0xff]
        %v233 = vld [vmem:[%s195 + $0xb0] sm:$0xff]
        %v234 = vld [vmem:[%s195 + $0xb8] sm:$0xff]
        %v235 = vld [vmem:[%s195 + $0xc0] sm:$0xff]
        %v236 = vld [vmem:[%s195 + $0xc8] sm:$0xff]
        %v237 = vld [vmem:[%s195 + $0xd0] sm:$0xff]
        %v238 = vld [vmem:[%s195 + $0xd8] sm:$0xff]
        %v239 = vld [vmem:[%s195 + $0xe0] sm:$0xff]
        %v240 = vld [vmem:[%s195 + $0xe8] sm:$0xff]
        %v241 = vld [vmem:[%s195 + $0xf0] sm:$0xff]
        %v242 = vld [vmem:[%s195 + $0xf8] sm:$0xff]
        %v243 = vld [vmem:[%s195 + $0x100] sm:$0xff]
        %v244 = vld [vmem:[%s195 + $0x108] sm:$0xff]
        %v245 = vld [vmem:[%s195 + $0x110] sm:$0xff]
        %v246 = vld [vmem:[%s195 + $0x118] sm:$0xff]
        %v247 = vld [vmem:[%s195 + $0x120] sm:$0xff]
        %v248 = vld [vmem:[%s195 + $0x128] sm:$0xff]
        %v249 = vld [vmem:[%s195 + $0x130] sm:$0xff]
        %v250 = vld [vmem:[%s195 + $0x138] sm:$0xff]
        %v251 = vld [vmem:[%s195 + $0x140] sm:$0xff]
        %v252 = vld [vmem:[%s195 + $0x148] sm:$0xff]
        %v253 = vld [vmem:[%s195 + $0x150] sm:$0xff]
        %v254 = vld [vmem:[%s195 + $0x158] sm:$0xff]
        %v255 = vld [vmem:[%s195 + $0x160] sm:$0xff]
        %v256 = vld [vmem:[%s195 + $0x168] sm:$0xff]
        %v257 = vld [vmem:[%s195 + $0x170] sm:$0xff]
        %v258 = vld [vmem:[%s195 + $0x178] sm:$0xff]
        %v259 = vld [vmem:[%s195 + $0x180] sm:$0xff]
        %v260 = vld [vmem:[%s195 + $0x188] sm:$0xff]
        %v261 = vld [vmem:[%s195 + $0x190] sm:$0xff]
        %v262 = vld [vmem:[%s195 + $0x198] sm:$0xff]
        %v263 = vld [vmem:[%s195 + $0x1a0] sm:$0xff]
        %v264 = vld [vmem:[%s195 + $0x1a8] sm:$0xff]
        %v265 = vld [vmem:[%s195 + $0x1b0] sm:$0xff]
        %v266 = vld [vmem:[%s195 + $0x1b8] sm:$0xff]
        %v267 = vld [vmem:[%s195 + $0x1c0] sm:$0xff]
        %v268 = vld [vmem:[%s195 + $0x1c8] sm:$0xff]
        %v269 = vld [vmem:[%s195 + $0x1d0] sm:$0xff]
        %v270 = vld [vmem:[%s195 + $0x1d8] sm:$0xff]
        %v271 = vld [vmem:[%s195 + $0x1e0] sm:$0xff]
        %v272 = vld [vmem:[%s195 + $0x1e8] sm:$0xff]
        %v273 = vld [vmem:[%s195 + $0x1f0] sm:$0xff]
        %v274 = vld [vmem:[%s195 + $0x1f8] sm:$0xff]
        %v275 = vld [vmem:[%s195 + $0x200] sm:$0xff]
        %v276 = vld [vmem:[%s195 + $0x208] sm:$0xff]
        %v277 = vld [vmem:[%s195 + $0x210] sm:$0xff]
        %v278 = vld [vmem:[%s195 + $0x218] sm:$0xff]
        %v279 = vld [vmem:[%s195 + $0x220] sm:$0xff]
        %v280 = vld [vmem:[%s195 + $0x228] sm:$0xff]
        %v281 = vld [vmem:[%s195 + $0x230] sm:$0xff]
        %v282 = vld [vmem:[%s195 + $0x238] sm:$0xff]
        %v283 = vld [vmem:[%s1] sm:$0xff]
        %v284 = vld [vmem:[%s1 + $0x8] sm:$0xff]
        %v285 = vld [vmem:[%s1 + $0x10] sm:$0xff]
        %v286 = vld [vmem:[%s1 + $0x18] sm:$0xff]
        %v287 = vld [vmem:[%s1 + $0x20] sm:$0xff]
        %v288 = vld [vmem:[%s1 + $0x28] sm:$0xff]
        %v289 = vld [vmem:[%s1 + $0x30] sm:$0xff]
        %v290 = vld [vmem:[%s1 + $0x38] sm:$0xff]
        %v291 = vld [vmem:[%s1 + $0x40] sm:$0xff]
        %v292 = vld [vmem:[%s1 + $0x48] sm:$0xff]
        %v293 = vld [vmem:[%s1 + $0x50] sm:$0xff]
        %v294 = vld [vmem:[%s1 + $0x58] sm:$0xff]
        %v295 = vld [vmem:[%s1 + $0x60] sm:$0xff]
        %v296 = vld [vmem:[%s1 + $0x68] sm:$0xff]
        %v297 = vld [vmem:[%s1 + $0x70] sm:$0xff]
        %v298 = vld [vmem:[%s1 + $0x78] sm:$0xff]
        %v299 = vld [vmem:[%s1 + $0x80] sm:$0xff]
        %v300 = vld [vmem:[%s1 + $0x88] sm:$0xff]
        %v301 = vld [vmem:[%s1 + $0x90] sm:$0xff]
        %v302 = vld [vmem:[%s1 + $0x98] sm:$0xff]
        %v303 = vld [vmem:[%s1 + $0xa0] sm:$0xff]
        %v304 = vld [vmem:[%s1 + $0xa8] sm:$0xff]
        %v305 = vld [vmem:[%s1 + $0xb0] sm:$0xff]
        %v306 = vld [vmem:[%s1 + $0xb8] sm:$0xff]
        %v307 = vld [vmem:[%s1 + $0xc0] sm:$0xff]
        %v308 = vld [vmem:[%s1 + $0xc8] sm:$0xff]
        %v309 = vld [vmem:[%s1 + $0xd0] sm:$0xff]
        %v310 = vld [vmem:[%s1 + $0xd8] sm:$0xff]
        %v311 = vld [vmem:[%s1 + $0xe0] sm:$0xff]
        %v312 = vld [vmem:[%s1 + $0xe8] sm:$0xff]
        %v313 = vld [vmem:[%s1 + $0xf0] sm:$0xff]
        %v314 = vld [vmem:[%s1 + $0xf8] sm:$0xff]
        %v315 = vld [vmem:[%s1 + $0x100] sm:$0xff]
        %v316 = vld [vmem:[%s1 + $0x108] sm:$0xff]
        %v317 = vld [vmem:[%s1 + $0x110] sm:$0xff]
        %v318 = vld [vmem:[%s1 + $0x118] sm:$0xff]
        %v319 = vld [vmem:[%s1 + $0x120] sm:$0xff]
        %v320 = vld [vmem:[%s1 + $0x128] sm:$0xff]
        %v321 = vld [vmem:[%s1 + $0x130] sm:$0xff]
        %v322 = vld [vmem:[%s1 + $0x138] sm:$0xff]
        %v323 = vld [vmem:[%s1 + $0x140] sm:$0xff]
        %v324 = vld [vmem:[%s1 + $0x148] sm:$0xff]
        %v325 = vld [vmem:[%s1 + $0x150] sm:$0xff]
        %v326 = vld [vmem:[%s1 + $0x158] sm:$0xff]
        %v327 = vld [vmem:[%s1 + $0x160] sm:$0xff]
        %v328 = vld [vmem:[%s1 + $0x168] sm:$0xff]
        %v329 = vld [vmem:[%s1 + $0x170] sm:$0xff]
        %v330 = vld [vmem:[%s1 + $0x178] sm:$0xff]
        %v331 = vld [vmem:[%s1 + $0x180] sm:$0xff]
        %v332 = vld [vmem:[%s1 + $0x188] sm:$0xff]
        %v333 = vld [vmem:[%s1 + $0x190] sm:$0xff]
        %v334 = vld [vmem:[%s1 + $0x198] sm:$0xff]
        %v335 = vld [vmem:[%s1 + $0x1a0] sm:$0xff]
        %v336 = vld [vmem:[%s1 + $0x1a8] sm:$0xff]
        %v337 = vld [vmem:[%s1 + $0x1b0] sm:$0xff]
        %v338 = vld [vmem:[%s1 + $0x1b8] sm:$0xff]
        %v339 = vld [vmem:[%s1 + $0x1c0] sm:$0xff]
        %v340 = vld [vmem:[%s1 + $0x1c8] sm:$0xff]
        %v341 = vld [vmem:[%s1 + $0x1d0] sm:$0xff]
        %v342 = vld [vmem:[%s1 + $0x1d8] sm:$0xff]
        %v343 = vld [vmem:[%s1 + $0x1e0] sm:$0xff]
        %v344 = vld [vmem:[%s1 + $0x1e8] sm:$0xff]
        %v345 = vld [vmem:[%s1 + $0x1f0] sm:$0xff]
        %v346 = vld [vmem:[%s1 + $0x1f8] sm:$0xff]
        %v347 = vld [vmem:[%s1 + $0x200] sm:$0xff]
        %v348 = vld [vmem:[%s1 + $0x208] sm:$0xff]
        %v349 = vld [vmem:[%s1 + $0x210] sm:$0xff]
        %v350 = vld [vmem:[%s1 + $0x218] sm:$0xff]
        %v351 = vld [vmem:[%s1 + $0x220] sm:$0xff]
        %v352 = vld [vmem:[%s1 + $0x228] sm:$0xff]
        %v353 = vld [vmem:[%s1 + $0x230] sm:$0xff]
        %v354 = vld [vmem:[%s1 + $0x238] sm:$0xff]
        %v355 = vld [vmem:[%s1 + $0x240] sm:$0xff]
        %v356 = vld [vmem:[%s1 + $0x248] sm:$0xff]
        %v357 = vld [vmem:[%s1 + $0x250] sm:$0xff]
        %v358 = vld [vmem:[%s1 + $0x258] sm:$0xff]
        %v359 = vld [vmem:[%s1 + $0x260] sm:$0xff]
        %v360 = vld [vmem:[%s1 + $0x268] sm:$0xff]
        %v361 = vld [vmem:[%s1 + $0x270] sm:$0xff]
        %v362 = vld [vmem:[%s1 + $0x278] sm:$0xff]
        %v363 = vld [vmem:[%s1 + $0x280] sm:$0xff]
        %v364 = vld [vmem:[%s1 + $0x288] sm:$0xff]
        %v365 = vld [vmem:[%s1 + $0x290] sm:$0xff]
        %v366 = vld [vmem:[%s1 + $0x298] sm:$0xff]
        %v367 = vld [vmem:[%s1 + $0x2a0] sm:$0xff]
        %v368 = vld [vmem:[%s1 + $0x2a8] sm:$0xff]
        %v369 = vld [vmem:[%s1 + $0x2b0] sm:$0xff]
        %v370 = vld [vmem:[%s1 + $0x2b8] sm:$0xff]
        %v371 = vld [vmem:[%s1 + $0x2c0] sm:$0xff]
        %v372 = vld [vmem:[%s1 + $0x2c8] sm:$0xff]
        %v373 = vld [vmem:[%s1 + $0x2d0] sm:$0xff]
        %v374 = vld [vmem:[%s1 + $0x2d8] sm:$0xff]
        %v375 = vld [vmem:[%s1 + $0x2e0] sm:$0xff]
        %v376 = vld [vmem:[%s1 + $0x2e8] sm:$0xff]
        %v377 = vld [vmem:[%s1 + $0x2f0] sm:$0xff]
        %v378 = vld [vmem:[%s1 + $0x2f8] sm:$0xff]
        %v379 = vld [vmem:[%s1 + $0x300] sm:$0xff]
        %v380 = vld [vmem:[%s1 + $0x308] sm:$0xff]
        %v381 = vld [vmem:[%s1 + $0x310] sm:$0xff]
        %v382 = vld [vmem:[%s1 + $0x318] sm:$0xff]
        %v383 = vld [vmem:[%s1 + $0x320] sm:$0xff]
        %v384 = vld [vmem:[%s1 + $0x328] sm:$0xff]
        %v385 = vld [vmem:[%s1 + $0x330] sm:$0xff]
        %v386 = vld [vmem:[%s1 + $0x338] sm:$0xff]
        %v387 = vld [vmem:[%s1 + $0x340] sm:$0xff]
        %v388 = vld [vmem:[%s1 + $0x348] sm:$0xff]
        %v389 = vld [vmem:[%s1 + $0x350] sm:$0xff]
        %v390 = vld [vmem:[%s1 + $0x358] sm:$0xff]
        %v391 = vld [vmem:[%s1 + $0x360] sm:$0xff]
        %v392 = vld [vmem:[%s1 + $0x368] sm:$0xff]
        %v393 = vld [vmem:[%s1 + $0x370] sm:$0xff]
        %v394 = vld [vmem:[%s1 + $0x378] sm:$0xff]
        %v395 = vld [vmem:[%s1 + $0x380] sm:$0xff]
        %v396 = vld [vmem:[%s1 + $0x388] sm:$0xff]
        %v397 = vld [vmem:[%s1 + $0x390] sm:$0xff]
        %v398 = vld [vmem:[%s1 + $0x398] sm:$0xff]
        %v399 = vld [vmem:[%s1 + $0x3a0] sm:$0xff]
        %v400 = vld [vmem:[%s1 + $0x3a8] sm:$0xff]
        %v401 = vld [vmem:[%s1 + $0x3b0] sm:$0xff]
        %v402 = vld [vmem:[%s1 + $0x3b8] sm:$0xff]
        %v403 = vld [vmem:[%s1 + $0x3c0] sm:$0xff]
        %v404 = vld [vmem:[%s1 + $0x3c8] sm:$0xff]
        %v405 = vld [vmem:[%s1 + $0x3d0] sm:$0xff]
        %v406 = vld [vmem:[%s1 + $0x3d8] sm:$0xff]
        %v407 = vld [vmem:[%s1 + $0x3e0] sm:$0xff]
        %v408 = vld [vmem:[%s1 + $0x3e8] sm:$0xff]
        %v409 = vld [vmem:[%s1 + $0x3f0] sm:$0xff]
        %v410 = vld [vmem:[%s1 + $0x3f8] sm:$0xff]
        %v411 = vld [vmem:[%s1 + $0x400] sm:$0x1]
        %vm412 = vcmask 7168
        %v414 = vsel %vm412, %v219, 0
        %v417 = vsel %vm412, %v228, 0
        %v420 = vsel %vm412, %v237, 0
        %v423 = vsel %vm412, %v246, 0
        %v426 = vsel %vm412, %v255, 0
        %v429 = vsel %vm412, %v264, 0
        %v432 = vsel %vm412, %v273, 0
        %v435 = vsel %vm412, %v282, 0
        %vm437 = vcmask 1040384
        %v439 = vsel %vm437, %v411, 0
        %441 = vmatprep.subr.mxu0 0.0
        %442 = vmatpush1.msra.mxu0 %v283
        %443 = vmatprep.subr.mxu0 0.0
        %444 = vmatpush1.msra.mxu0 %v284
        %445 = vmatprep.subr.mxu0 0.0
        %446 = vmatpush1.msra.mxu0 %v285
        %447 = vmatprep.subr.mxu0 0.0
        %448 = vmatpush1.msra.mxu0 %v286
        %449 = vmatprep.subr.mxu0 0.0
        %450 = vmatpush1.msra.mxu0 %v287
        %451 = vmatprep.subr.mxu0 0.0
        %452 = vmatpush1.msra.mxu0 %v288
        %453 = vmatprep.subr.mxu0 0.0
        %454 = vmatpush1.msra.mxu0 %v289
        %455 = vmatprep.subr.mxu0 0.0
        %456 = vmatpush1.msra.mxu0 %v290
        %457 = vmatprep.subr.mxu0 0.0
        %458 = vmatpush1.msra.mxu0 %v291
        %459 = vmatprep.subr.mxu0 0.0
        %460 = vmatpush1.msra.mxu0 %v292
        %461 = vmatprep.subr.mxu0 0.0
        %462 = vmatpush1.msra.mxu0 %v293
        %463 = vmatprep.subr.mxu0 0.0
        %464 = vmatpush1.msra.mxu0 %v294
        %465 = vmatprep.subr.mxu0 0.0
        %466 = vmatpush1.msra.mxu0 %v295
        %467 = vmatprep.subr.mxu0 0.0
        %468 = vmatpush1.msra.mxu0 %v296
        %469 = vmatprep.subr.mxu0 0.0
        %470 = vmatpush1.msra.mxu0 %v297
        %471 = vmatprep.subr.mxu0 0.0
        %472 = vmatpush1.msra.mxu0 %v298
        %473 = vmatprep.subr.mxu0 0.0
        %474 = vmatpush1.msra.mxu0 %v299
        %475 = vmatprep.subr.mxu0 0.0
        %476 = vmatpush1.msra.mxu0 %v300
        %477 = vmatprep.subr.mxu0 0.0
        %478 = vmatpush1.msra.mxu0 %v301
        %479 = vmatprep.subr.mxu0 0.0
        %480 = vmatpush1.msra.mxu0 %v302
        %481 = vmatprep.subr.mxu0 0.0
        %482 = vmatpush1.msra.mxu0 %v303
        %483 = vmatprep.subr.mxu0 0.0
        %484 = vmatpush1.msra.mxu0 %v304
        %485 = vmatprep.subr.mxu0 0.0
        %486 = vmatpush1.msra.mxu0 %v305
        %487 = vmatprep.subr.mxu0 0.0
        %488 = vmatpush1.msra.mxu0 %v306
        %489 = vmatprep.subr.mxu0 0.0
        %490 = vmatpush1.msra.mxu0 %v307
        %491 = vmatprep.subr.mxu0 0.0
        %492 = vmatpush1.msra.mxu0 %v308
        %493 = vmatprep.subr.mxu0 0.0
        %494 = vmatpush1.msra.mxu0 %v309
        %495 = vmatprep.subr.mxu0 0.0
        %496 = vmatpush1.msra.mxu0 %v310
        %497 = vmatprep.subr.mxu0 0.0
        %498 = vmatpush1.msra.mxu0 %v311
        %499 = vmatprep.subr.mxu0 0.0
        %500 = vmatpush1.msra.mxu0 %v312
        %501 = vmatprep.subr.mxu0 0.0
        %502 = vmatpush1.msra.mxu0 %v313
        %503 = vmatprep.subr.mxu0 0.0
        %504 = vmatpush1.msra.mxu0 %v314
        %505 = vmatprep.mubr.f32.mxu0 %v212
        %506 = vmatmul.mubr.f32.gmra.mrb[0].mxu0 %v211
        %v507 = vpop.f32.mrb[0].mxu0
        %v508 = vadd.f32 0.0, %v507
        %v509 = vpop.f32.mrb[0].mxu0
        %510 = vmatprep.mubr.f32.mxu0 %v221
        %511 = vmatmul.mubr.f32.gmra.mrb[0].mxu0 %v220
        %v512 = vpop.f32.mrb[0].mxu0
        %v513 = vadd.f32 0.0, %v512
        %v514 = vpop.f32.mrb[0].mxu0
        %515 = vmatprep.mubr.f32.mxu0 %v230
        %516 = vmatmul.mubr.f32.gmra.mrb[0].mxu0 %v229
        %v517 = vpop.f32.mrb[0].mxu0
        %v518 = vadd.f32 0.0, %v517
        %v519 = vpop.f32.mrb[0].mxu0
        %520 = vmatprep.mubr.f32.mxu0 %v239
        %521 = vmatmul.mubr.f32.gmra.mrb[0].mxu0 %v238
        %v522 = vpop.f32.mrb[0].mxu0
        %v523 = vadd.f32 0.0, %v522
        %v524 = vpop.f32.mrb[0].mxu0
        %525 = vmatprep.mubr.f32.mxu0 %v248
        %526 = vmatmul.mubr.f32.gmra.mrb[0].mxu0 %v247
        %v527 = vpop.f32.mrb[0].mxu0
        %v528 = vadd.f32 0.0, %v527
        %v529 = vpop.f32.mrb[0].mxu0
        %530 = vmatprep.mubr.f32.mxu0 %v257
        %531 = vmatmul.mubr.f32.gmra.mrb[0].mxu0 %v256
        %v532 = vpop.f32.mrb[0].mxu0
        %v533 = vadd.f32 0.0, %v532
        %v534 = vpop.f32.mrb[0].mxu0
        %535 = vmatprep.mubr.f32.mxu0 %v266
        %536 = vmatmul.mubr.f32.gmra.mrb[0].mxu0 %v265
        %v537 = vpop.f32.mrb[0].mxu0
        %v538 = vadd.f32 0.0, %v537
        %v539 = vpop.f32.mrb[0].mxu0
        %540 = vmatprep.mubr.f32.mxu0 %v275
        %541 = vmatmul.mubr.f32.gmra.mrb[0].mxu0 %v274
        %v542 = vpop.f32.mrb[0].mxu0
        %v543 = vadd.f32 0.0, %v542
        %v544 = vpop.f32.mrb[0].mxu0
        %545 = vdwg.mxu0
        %546 = vmatprep.subr.mxu0 0.0
        %547 = vmatpush1.msra.mxu0 %v315
        %548 = vmatprep.subr.mxu0 0.0
        %549 = vmatpush1.msra.mxu0 %v316
        %550 = vmatprep.subr.mxu0 0.0
        %551 = vmatpush1.msra.mxu0 %v317
        %552 = vmatprep.subr.mxu0 0.0
        %553 = vmatpush1.msra.mxu0 %v318
        %554 = vmatprep.subr.mxu0 0.0
        %555 = vmatpush1.msra.mxu0 %v319
        %556 = vmatprep.subr.mxu0 0.0
        %557 = vmatpush1.msra.mxu0 %v320
        %558 = vmatprep.subr.mxu0 0.0
        %559 = vmatpush1.msra.mxu0 %v321
        %560 = vmatprep.subr.mxu0 0.0
        %561 = vmatpush1.msra.mxu0 %v322
        %562 = vmatprep.subr.mxu0 0.0
        %563 = vmatpush1.msra.mxu0 %v323
        %564 = vmatprep.subr.mxu0 0.0
        %565 = vmatpush1.msra.mxu0 %v324
        %566 = vmatprep.subr.mxu0 0.0
        %567 = vmatpush1.msra.mxu0 %v325
        %568 = vmatprep.subr.mxu0 0.0
        %569 = vmatpush1.msra.mxu0 %v326
        %570 = vmatprep.subr.mxu0 0.0
        %571 = vmatpush1.msra.mxu0 %v327
        %572 = vmatprep.subr.mxu0 0.0
        %573 = vmatpush1.msra.mxu0 %v328
        %574 = vmatprep.subr.mxu0 0.0
        %575 = vmatpush1.msra.mxu0 %v329
        %576 = vmatprep.subr.mxu0 0.0
        %577 = vmatpush1.msra.mxu0 %v330
        %578 = vmatprep.subr.mxu0 0.0
        %579 = vmatpush1.msra.mxu0 %v331
        %580 = vmatprep.subr.mxu0 0.0
        %581 = vmatpush1.msra.mxu0 %v332
        %582 = vmatprep.subr.mxu0 0.0
        %583 = vmatpush1.msra.mxu0 %v333
        %584 = vmatprep.subr.mxu0 0.0
        %585 = vmatpush1.msra.mxu0 %v334
        %586 = vmatprep.subr.mxu0 0.0
        %587 = vmatpush1.msra.mxu0 %v335
        %588 = vmatprep.subr.mxu0 0.0
        %589 = vmatpush1.msra.mxu0 %v336
        %590 = vmatprep.subr.mxu0 0.0
        %591 = vmatpush1.msra.mxu0 %v337
        %592 = vmatprep.subr.mxu0 0.0
        %593 = vmatpush1.msra.mxu0 %v338
        %594 = vmatprep.subr.mxu0 0.0
        %595 = vmatpush1.msra.mxu0 %v339
        %596 = vmatprep.subr.mxu0 0.0
        %597 = vmatpush1.msra.mxu0 %v340
        %598 = vmatprep.subr.mxu0 0.0
        %599 = vmatpush1.msra.mxu0 %v341
        %600 = vmatprep.subr.mxu0 0.0
        %601 = vmatpush1.msra.mxu0 %v342
        %602 = vmatprep.subr.mxu0 0.0
        %603 = vmatpush1.msra.mxu0 %v343
        %604 = vmatprep.subr.mxu0 0.0
        %605 = vmatpush1.msra.mxu0 %v344
        %606 = vmatprep.subr.mxu0 0.0
        %607 = vmatpush1.msra.mxu0 %v345
        %608 = vmatprep.subr.mxu0 0.0
        %609 = vmatpush1.msra.mxu0 %v346
        %610 = vmatprep.mubr.f32.mxu0 %v214
        %611 = vmatmul.mubr.f32.gmra.mrb[0].mxu0 %v213
        %v612 = vpop.f32.mrb[0].mxu0
        %v613 = vadd.f32 %v508, %v612
        %v614 = vpop.f32.mrb[0].mxu0
        %615 = vmatprep.mubr.f32.mxu0 %v223
        %616 = vmatmul.mubr.f32.gmra.mrb[0].mxu0 %v222
        %v617 = vpop.f32.mrb[0].mxu0
        %v618 = vadd.f32 %v513, %v617
        %v619 = vpop.f32.mrb[0].mxu0
        %620 = vmatprep.mubr.f32.mxu0 %v232
        %621 = vmatmul.mubr.f32.gmra.mrb[0].mxu0 %v231
        %v622 = vpop.f32.mrb[0].mxu0
        %v623 = vadd.f32 %v518, %v622
        %v624 = vpop.f32.mrb[0].mxu0
        %625 = vmatprep.mubr.f32.mxu0 %v241
        %626 = vmatmul.mubr.f32.gmra.mrb[0].mxu0 %v240
        %v627 = vpop.f32.mrb[0].mxu0
        %v628 = vadd.f32 %v523, %v627
        %v629 = vpop.f32.mrb[0].mxu0
        %630 = vmatprep.mubr.f32.mxu0 %v250
        %631 = vmatmul.mubr.f32.gmra.mrb[0].mxu0 %v249
        %v632 = vpop.f32.mrb[0].mxu0
        %v633 = vadd.f32 %v528, %v632
        %v634 = vpop.f32.mrb[0].mxu0
        %635 = vmatprep.mubr.f32.mxu0 %v259
        %636 = vmatmul.mubr.f32.gmra.mrb[0].mxu0 %v258
        %v637 = vpop.f32.mrb[0].mxu0
        %v638 = vadd.f32 %v533, %v637
        %v639 = vpop.f32.mrb[0].mxu0
        %640 = vmatprep.mubr.f32.mxu0 %v268
        %641 = vmatmul.mubr.f32.gmra.mrb[0].mxu0 %v267
        %v642 = vpop.f32.mrb[0].mxu0
        %v643 = vadd.f32 %v538, %v642
        %v644 = vpop.f32.mrb[0].mxu0
        %645 = vmatprep.mubr.f32.mxu0 %v277
        %646 = vmatmul.mubr.f32.gmra.mrb[0].mxu0 %v276
        %v647 = vpop.f32.mrb[0].mxu0
        %v648 = vadd.f32 %v543, %v647
        %v649 = vpop.f32.mrb[0].mxu0
        %650 = vdwg.mxu0
        %651 = vmatprep.subr.mxu0 0.0
        %652 = vmatpush1.msra.mxu0 %v347
        %653 = vmatprep.subr.mxu0 0.0
        %654 = vmatpush1.msra.mxu0 %v348
        %655 = vmatprep.subr.mxu0 0.0
        %656 = vmatpush1.msra.mxu0 %v349
        %657 = vmatprep.subr.mxu0 0.0
        %658 = vmatpush1.msra.mxu0 %v350
        %659 = vmatprep.subr.mxu0 0.0
        %660 = vmatpush1.msra.mxu0 %v351
        %661 = vmatprep.subr.mxu0 0.0
        %662 = vmatpush1.msra.mxu0 %v352
        %663 = vmatprep.subr.mxu0 0.0
        %664 = vmatpush1.msra.mxu0 %v353
        %665 = vmatprep.subr.mxu0 0.0
        %666 = vmatpush1.msra.mxu0 %v354
        %667 = vmatprep.subr.mxu0 0.0
        %668 = vmatpush1.msra.mxu0 %v355
        %669 = vmatprep.subr.mxu0 0.0
        %670 = vmatpush1.msra.mxu0 %v356
        %671 = vmatprep.subr.mxu0 0.0
        %672 = vmatpush1.msra.mxu0 %v357
        %673 = vmatprep.subr.mxu0 0.0
        %674 = vmatpush1.msra.mxu0 %v358
        %675 = vmatprep.subr.mxu0 0.0
        %676 = vmatpush1.msra.mxu0 %v359
        %677 = vmatprep.subr.mxu0 0.0
        %678 = vmatpush1.msra.mxu0 %v360
        %679 = vmatprep.subr.mxu0 0.0
        %680 = vmatpush1.msra.mxu0 %v361
        %681 = vmatprep.subr.mxu0 0.0
        %682 = vmatpush1.msra.mxu0 %v362
        %683 = vmatprep.subr.mxu0 0.0
        %684 = vmatpush1.msra.mxu0 %v363
        %685 = vmatprep.subr.mxu0 0.0
        %686 = vmatpush1.msra.mxu0 %v364
        %687 = vmatprep.subr.mxu0 0.0
        %688 = vmatpush1.msra.mxu0 %v365
        %689 = vmatprep.subr.mxu0 0.0
        %690 = vmatpush1.msra.mxu0 %v366
        %691 = vmatprep.subr.mxu0 0.0
        %692 = vmatpush1.msra.mxu0 %v367
        %693 = vmatprep.subr.mxu0 0.0
        %694 = vmatpush1.msra.mxu0 %v368
        %695 = vmatprep.subr.mxu0 0.0
        %696 = vmatpush1.msra.mxu0 %v369
        %697 = vmatprep.subr.mxu0 0.0
        %698 = vmatpush1.msra.mxu0 %v370
        %699 = vmatprep.subr.mxu0 0.0
        %700 = vmatpush1.msra.mxu0 %v371
        %701 = vmatprep.subr.mxu0 0.0
        %702 = vmatpush1.msra.mxu0 %v372
        %703 = vmatprep.subr.mxu0 0.0
        %704 = vmatpush1.msra.mxu0 %v373
        %705 = vmatprep.subr.mxu0 0.0
        %706 = vmatpush1.msra.mxu0 %v374
        %707 = vmatprep.subr.mxu0 0.0
        %708 = vmatpush1.msra.mxu0 %v375
        %709 = vmatprep.subr.mxu0 0.0
        %710 = vmatpush1.msra.mxu0 %v376
        %711 = vmatprep.subr.mxu0 0.0
        %712 = vmatpush1.msra.mxu0 %v377
        %713 = vmatprep.subr.mxu0 0.0
        %714 = vmatpush1.msra.mxu0 %v378
        %715 = vmatprep.mubr.f32.mxu0 %v216
        %716 = vmatmul.mubr.f32.gmra.mrb[0].mxu0 %v215
        %v717 = vpop.f32.mrb[0].mxu0
        %v718 = vadd.f32 %v613, %v717
        %v719 = vpop.f32.mrb[0].mxu0
        %720 = vmatprep.mubr.f32.mxu0 %v225
        %721 = vmatmul.mubr.f32.gmra.mrb[0].mxu0 %v224
        %v722 = vpop.f32.mrb[0].mxu0
        %v723 = vadd.f32 %v618, %v722
        %v724 = vpop.f32.mrb[0].mxu0
        %725 = vmatprep.mubr.f32.mxu0 %v234
        %726 = vmatmul.mubr.f32.gmra.mrb[0].mxu0 %v233
        %v727 = vpop.f32.mrb[0].mxu0
        %v728 = vadd.f32 %v623, %v727
        %v729 = vpop.f32.mrb[0].mxu0
        %730 = vmatprep.mubr.f32.mxu0 %v243
        %731 = vmatmul.mubr.f32.gmra.mrb[0].mxu0 %v242
        %v732 = vpop.f32.mrb[0].mxu0
        %v733 = vadd.f32 %v628, %v732
        %v734 = vpop.f32.mrb[0].mxu0
        %735 = vmatprep.mubr.f32.mxu0 %v252
        %736 = vmatmul.mubr.f32.gmra.mrb[0].mxu0 %v251
        %v737 = vpop.f32.mrb[0].mxu0
        %v738 = vadd.f32 %v633, %v737
        %v739 = vpop.f32.mrb[0].mxu0
        %740 = vmatprep.mubr.f32.mxu0 %v261
        %741 = vmatmul.mubr.f32.gmra.mrb[0].mxu0 %v260
        %v742 = vpop.f32.mrb[0].mxu0
        %v743 = vadd.f32 %v638, %v742
        %v744 = vpop.f32.mrb[0].mxu0
        %745 = vmatprep.mubr.f32.mxu0 %v270
        %746 = vmatmul.mubr.f32.gmra.mrb[0].mxu0 %v269
        %v747 = vpop.f32.mrb[0].mxu0
        %v748 = vadd.f32 %v643, %v747
        %v749 = vpop.f32.mrb[0].mxu0
        %750 = vmatprep.mubr.f32.mxu0 %v279
        %751 = vmatmul.mubr.f32.gmra.mrb[0].mxu0 %v278
        %v752 = vpop.f32.mrb[0].mxu0
        %v753 = vadd.f32 %v648, %v752
        %v754 = vpop.f32.mrb[0].mxu0
        %755 = vdwg.mxu0
        %756 = vmatprep.subr.mxu0 0.0
        %757 = vmatpush1.msra.mxu0 %v379
        %758 = vmatprep.subr.mxu0 0.0
        %759 = vmatpush1.msra.mxu0 %v380
        %760 = vmatprep.subr.mxu0 0.0
        %761 = vmatpush1.msra.mxu0 %v381
        %762 = vmatprep.subr.mxu0 0.0
        %763 = vmatpush1.msra.mxu0 %v382
        %764 = vmatprep.subr.mxu0 0.0
        %765 = vmatpush1.msra.mxu0 %v383
        %766 = vmatprep.subr.mxu0 0.0
        %767 = vmatpush1.msra.mxu0 %v384
        %768 = vmatprep.subr.mxu0 0.0
        %769 = vmatpush1.msra.mxu0 %v385
        %770 = vmatprep.subr.mxu0 0.0
        %771 = vmatpush1.msra.mxu0 %v386
        %772 = vmatprep.subr.mxu0 0.0
        %773 = vmatpush1.msra.mxu0 %v387
        %774 = vmatprep.subr.mxu0 0.0
        %775 = vmatpush1.msra.mxu0 %v388
        %776 = vmatprep.subr.mxu0 0.0
        %777 = vmatpush1.msra.mxu0 %v389
        %778 = vmatprep.subr.mxu0 0.0
        %779 = vmatpush1.msra.mxu0 %v390
        %780 = vmatprep.subr.mxu0 0.0
        %781 = vmatpush1.msra.mxu0 %v391
        %782 = vmatprep.subr.mxu0 0.0
        %783 = vmatpush1.msra.mxu0 %v392
        %784 = vmatprep.subr.mxu0 0.0
        %785 = vmatpush1.msra.mxu0 %v393
        %786 = vmatprep.subr.mxu0 0.0
        %787 = vmatpush1.msra.mxu0 %v394
        %788 = vmatprep.subr.mxu0 0.0
        %789 = vmatpush1.msra.mxu0 %v395
        %790 = vmatprep.subr.mxu0 0.0
        %791 = vmatpush1.msra.mxu0 %v396
        %792 = vmatprep.subr.mxu0 0.0
        %793 = vmatpush1.msra.mxu0 %v397
        %794 = vmatprep.subr.mxu0 0.0
        %795 = vmatpush1.msra.mxu0 %v398
        %796 = vmatprep.subr.mxu0 0.0
        %797 = vmatpush1.msra.mxu0 %v399
        %798 = vmatprep.subr.mxu0 0.0
        %799 = vmatpush1.msra.mxu0 %v400
        %800 = vmatprep.subr.mxu0 0.0
        %801 = vmatpush1.msra.mxu0 %v401
        %802 = vmatprep.subr.mxu0 0.0
        %803 = vmatpush1.msra.mxu0 %v402
        %804 = vmatprep.subr.mxu0 0.0
        %805 = vmatpush1.msra.mxu0 %v403
        %806 = vmatprep.subr.mxu0 0.0
        %807 = vmatpush1.msra.mxu0 %v404
        %808 = vmatprep.subr.mxu0 0.0
        %809 = vmatpush1.msra.mxu0 %v405
        %810 = vmatprep.subr.mxu0 0.0
        %811 = vmatpush1.msra.mxu0 %v406
        %812 = vmatprep.subr.mxu0 0.0
        %813 = vmatpush1.msra.mxu0 %v407
        %814 = vmatprep.subr.mxu0 0.0
        %815 = vmatpush1.msra.mxu0 %v408
        %816 = vmatprep.subr.mxu0 0.0
        %817 = vmatpush1.msra.mxu0 %v409
        %818 = vmatprep.subr.mxu0 0.0
        %819 = vmatpush1.msra.mxu0 %v410
        %820 = vmatprep.mubr.f32.mxu0 %v218
        %821 = vmatmul.mubr.f32.gmra.mrb[0].mxu0 %v217
        %v822 = vpop.f32.mrb[0].mxu0
        %v823 = vadd.f32 %v718, %v822
        %v824 = vpop.f32.mrb[0].mxu0
        %825 = vmatprep.mubr.f32.mxu0 %v227
        %826 = vmatmul.mubr.f32.gmra.mrb[0].mxu0 %v226
        %v827 = vpop.f32.mrb[0].mxu0
        %v828 = vadd.f32 %v723, %v827
        %v829 = vpop.f32.mrb[0].mxu0
        %830 = vmatprep.mubr.f32.mxu0 %v236
        %831 = vmatmul.mubr.f32.gmra.mrb[0].mxu0 %v235
        %v832 = vpop.f32.mrb[0].mxu0
        %v833 = vadd.f32 %v728, %v832
        %v834 = vpop.f32.mrb[0].mxu0
        %835 = vmatprep.mubr.f32.mxu0 %v245
        %836 = vmatmul.mubr.f32.gmra.mrb[0].mxu0 %v244
        %v837 = vpop.f32.mrb[0].mxu0
        %v838 = vadd.f32 %v733, %v837
        %v839 = vpop.f32.mrb[0].mxu0
        %840 = vmatprep.mubr.f32.mxu0 %v254
        %841 = vmatmul.mubr.f32.gmra.mrb[0].mxu0 %v253
        %v842 = vpop.f32.mrb[0].mxu0
        %v843 = vadd.f32 %v738, %v842
        %v844 = vpop.f32.mrb[0].mxu0
        %845 = vmatprep.mubr.f32.mxu0 %v263
        %846 = vmatmul.mubr.f32.gmra.mrb[0].mxu0 %v262
        %v847 = vpop.f32.mrb[0].mxu0
        %v848 = vadd.f32 %v743, %v847
        %v849 = vpop.f32.mrb[0].mxu0
        %850 = vmatprep.mubr.f32.mxu0 %v272
        %851 = vmatmul.mubr.f32.gmra.mrb[0].mxu0 %v271
        %v852 = vpop.f32.mrb[0].mxu0
        %v853 = vadd.f32 %v748, %v852
        %v854 = vpop.f32.mrb[0].mxu0
        %855 = vmatprep.mubr.f32.mxu0 %v281
        %856 = vmatmul.mubr.f32.gmra.mrb[0].mxu0 %v280
        %v857 = vpop.f32.mrb[0].mxu0
        %v858 = vadd.f32 %v753, %v857
        %v859 = vpop.f32.mrb[0].mxu0
        %860 = vdwg.mxu0
        %861 = vmatprep.subr.mxu0 0.0
        %862 = vmatpush1.msra.mxu0 %v439
        %863 = vmatprep.subr.mxu0 0.0
        %864 = vmatpush1.msra.mxu0 0.0
        %865 = vmatprep.subr.mxu0 0.0
        %866 = vmatpush1.msra.mxu0 0.0
        %867 = vmatprep.subr.mxu0 0.0
        %868 = vmatpush1.msra.mxu0 0.0
        %869 = vmatprep.subr.mxu0 0.0
        %870 = vmatpush1.msra.mxu0 0.0
        %871 = vmatprep.subr.mxu0 0.0
        %872 = vmatpush1.msra.mxu0 0.0
        %873 = vmatprep.subr.mxu0 0.0
        %874 = vmatpush1.msra.mxu0 0.0
        %875 = vmatprep.subr.mxu0 0.0
        %876 = vmatpush1.msra.mxu0 0.0
        %877 = vmatprep.subr.mxu0 0.0
        %878 = vmatpush1.msra.mxu0 0.0
        %879 = vmatprep.subr.mxu0 0.0
        %880 = vmatpush1.msra.mxu0 0.0
        %881 = vmatprep.subr.mxu0 0.0
        %882 = vmatpush1.msra.mxu0 0.0
        %883 = vmatprep.subr.mxu0 0.0
        %884 = vmatpush1.msra.mxu0 0.0
        %885 = vmatprep.subr.mxu0 0.0
        %886 = vmatpush1.msra.mxu0 0.0
        %887 = vmatprep.subr.mxu0 0.0
        %888 = vmatpush1.msra.mxu0 0.0
        %889 = vmatprep.subr.mxu0 0.0
        %890 = vmatpush1.msra.mxu0 0.0
        %891 = vmatprep.subr.mxu0 0.0
        %892 = vmatpush1.msra.mxu0 0.0
        %893 = vmatprep.subr.mxu0 0.0
        %894 = vmatpush1.msra.mxu0 0.0
        %895 = vmatprep.subr.mxu0 0.0
        %896 = vmatpush1.msra.mxu0 0.0
        %897 = vmatprep.subr.mxu0 0.0
        %898 = vmatpush1.msra.mxu0 0.0
        %899 = vmatprep.subr.mxu0 0.0
        %900 = vmatpush1.msra.mxu0 0.0
        %901 = vmatprep.subr.mxu0 0.0
        %902 = vmatpush1.msra.mxu0 0.0
        %903 = vmatprep.subr.mxu0 0.0
        %904 = vmatpush1.msra.mxu0 0.0
        %905 = vmatprep.subr.mxu0 0.0
        %906 = vmatpush1.msra.mxu0 0.0
        %907 = vmatprep.subr.mxu0 0.0
        %908 = vmatpush1.msra.mxu0 0.0
        %909 = vmatprep.subr.mxu0 0.0
        %910 = vmatpush1.msra.mxu0 0.0
        %911 = vmatprep.subr.mxu0 0.0
        %912 = vmatpush1.msra.mxu0 0.0
        %913 = vmatprep.subr.mxu0 0.0
        %914 = vmatpush1.msra.mxu0 0.0
        %915 = vmatprep.subr.mxu0 0.0
        %916 = vmatpush1.msra.mxu0 0.0
        %917 = vmatprep.subr.mxu0 0.0
        %918 = vmatpush1.msra.mxu0 0.0
        %919 = vmatprep.subr.mxu0 0.0
        %920 = vmatpush1.msra.mxu0 0.0
        %921 = vmatprep.subr.mxu0 0.0
        %922 = vmatpush1.msra.mxu0 0.0
        %923 = vmatprep.subr.mxu0 0.0
        %924 = vmatpush1.msra.mxu0 0.0
        %925 = vmatprep.mubr.f32.mxu0 0.0
        %926 = vmatmul.mubr.f32.gmra.mrb[0].mxu0 %v414
        %v927 = vpop.f32.mrb[0].mxu0
        %v928 = vadd.f32 %v823, %v927
        %v929 = vpop.f32.mrb[0].mxu0
        %930 = vmatprep.mubr.f32.mxu0 0.0
        %931 = vmatmul.mubr.f32.gmra.mrb[0].mxu0 %v417
        %v932 = vpop.f32.mrb[0].mxu0
        %v933 = vadd.f32 %v828, %v932
        %v934 = vpop.f32.mrb[0].mxu0
        %935 = vmatprep.mubr.f32.mxu0 0.0
        %936 = vmatmul.mubr.f32.gmra.mrb[0].mxu0 %v420
        %v937 = vpop.f32.mrb[0].mxu0
        %v938 = vadd.f32 %v833, %v937
        %v939 = vpop.f32.mrb[0].mxu0
        %940 = vmatprep.mubr.f32.mxu0 0.0
        %941 = vmatmul.mubr.f32.gmra.mrb[0].mxu0 %v423
        %v942 = vpop.f32.mrb[0].mxu0
        %v943 = vadd.f32 %v838, %v942
        %v944 = vpop.f32.mrb[0].mxu0
        %945 = vmatprep.mubr.f32.mxu0 0.0
        %946 = vmatmul.mubr.f32.gmra.mrb[0].mxu0 %v426
        %v947 = vpop.f32.mrb[0].mxu0
        %v948 = vadd.f32 %v843, %v947
        %v949 = vpop.f32.mrb[0].mxu0
        %950 = vmatprep.mubr.f32.mxu0 0.0
        %951 = vmatmul.mubr.f32.gmra.mrb[0].mxu0 %v429
        %v952 = vpop.f32.mrb[0].mxu0
        %v953 = vadd.f32 %v848, %v952
        %v954 = vpop.f32.mrb[0].mxu0
        %955 = vmatprep.mubr.f32.mxu0 0.0
        %956 = vmatmul.mubr.f32.gmra.mrb[0].mxu0 %v432
        %v957 = vpop.f32.mrb[0].mxu0
        %v958 = vadd.f32 %v853, %v957
        %v959 = vpop.f32.mrb[0].mxu0
        %960 = vmatprep.mubr.f32.mxu0 0.0
        %961 = vmatmul.mubr.f32.gmra.mrb[0].mxu0 %v435
        %v962 = vpop.f32.mrb[0].mxu0
        %v963 = vadd.f32 %v858, %v962
        %v964 = vpop.f32.mrb[0].mxu0
        %965 = vdwg.mxu0
        %v966 = vmax.f32 %v928, 1e-10
        %v967 = vmax.f32 %v933, 1e-10
        %v968 = vmax.f32 %v938, 1e-10
        %v969 = vmax.f32 %v943, 1e-10
        %v970 = vmax.f32 %v948, 1e-10
        %v971 = vmax.f32 %v953, 1e-10
        %v972 = vmax.f32 %v958, 1e-10
        %v973 = vmax.f32 %v963, 1e-10
        %v974 = vlog2.pop %v966
        %v975 = vmul.f32 %v974, 0.6931472
        %v976 = vlog2.pop %v967
        %v977 = vmul.f32 %v976, 0.6931472
        %v978 = vlog2.pop %v968
        %v979 = vmul.f32 %v978, 0.6931472
        %v980 = vlog2.pop %v969
        %v981 = vmul.f32 %v980, 0.6931472
        %v982 = vlog2.pop %v970
        %v983 = vmul.f32 %v982, 0.6931472
        %v984 = vlog2.pop %v971
        %v985 = vmul.f32 %v984, 0.6931472
        %v986 = vlog2.pop %v972
        %v987 = vmul.f32 %v986, 0.6931472
        %v988 = vlog2.pop %v973
        %v989 = vmul.f32 %v988, 0.6931472
        %v990 = vmul.f32 %v975, 0.4342945
        %v991 = vmul.f32 %v977, 0.4342945
        %v992 = vmul.f32 %v979, 0.4342945
        %v993 = vmul.f32 %v981, 0.4342945
        %v994 = vmul.f32 %v983, 0.4342945
        %v995 = vmul.f32 %v985, 0.4342945
        %v996 = vmul.f32 %v987, 0.4342945
        %v997 = vmul.f32 %v989, 0.4342945
        %v998 = vmul.f32 %v990, 10.0
        %v999 = vmul.f32 %v991, 10.0
        %v1000 = vmul.f32 %v992, 10.0
        %v1001 = vmul.f32 %v993, 10.0
        %v1002 = vmul.f32 %v994, 10.0
        %v1003 = vmul.f32 %v995, 10.0
        %v1004 = vmul.f32 %v996, 10.0
        %v1005 = vmul.f32 %v997, 10.0
        %vm1006 = vcmask 523264
        %1007 = vst.msk [vmem:[%s178] sm:$0xff] %vm1006, %v998
        %1008 = vst.msk [vmem:[%s178 + $0x8] sm:$0xff] %vm1006, %v999
        %1009 = vst.msk [vmem:[%s178 + $0x10] sm:$0xff] %vm1006, %v1000
        %1010 = vst.msk [vmem:[%s178 + $0x18] sm:$0xff] %vm1006, %v1001
        %1011 = vst.msk [vmem:[%s178 + $0x20] sm:$0xff] %vm1006, %v1002
        %1012 = vst.msk [vmem:[%s178 + $0x28] sm:$0xff] %vm1006, %v1003
        %1013 = vst.msk [vmem:[%s178 + $0x30] sm:$0xff] %vm1006, %v1004
        %1014 = vst.msk [vmem:[%s178 + $0x38] sm:$0xff] %vm1006, %v1005
        %s1015 = smul.u32 %s15, 64
        %v1016 = vlaneseq
        %v1017 = vshrl.u32 %v1016, 7
        %v1018 = vadd.s32 %v1017, 8
        %v1019 = vadd.s32 %v1017, 16
        %v1020 = vadd.s32 %v1017, 24
        %v1021 = vadd.s32 %v1017, 32
        %v1022 = vadd.s32 %v1017, 40
        %v1023 = vadd.s32 %v1017, 48
        %v1024 = vadd.s32 %v1017, 56
        %v1025 = vstv %s1015
        %v1026 = vadd.s32 %v1025, %v1017
        %v1027 = vadd.s32 %v1025, %v1018
        %v1028 = vadd.s32 %v1025, %v1019
        %v1029 = vadd.s32 %v1025, %v1020
        %v1030 = vadd.s32 %v1025, %v1021
        %v1031 = vadd.s32 %v1025, %v1022
        %v1032 = vadd.s32 %v1025, %v1023
        %v1033 = vadd.s32 %v1025, %v1024
        %vm1034 = vcmp.lt.s32.totalorder %v1026, 120
        %vm1035 = vcmp.lt.s32.totalorder %v1027, 120
        %vm1036 = vcmp.lt.s32.totalorder %v1028, 120
        %vm1037 = vcmp.lt.s32.totalorder %v1029, 120
        %vm1038 = vcmp.lt.s32.totalorder %v1030, 120
        %vm1039 = vcmp.lt.s32.totalorder %v1031, 120
        %vm1040 = vcmp.lt.s32.totalorder %v1032, 120
        %vm1041 = vcmp.lt.s32.totalorder %v1033, 120
        %v1042 = vsel %vm1034, %v998, -inf
        %v1043 = vsel %vm1035, %v999, -inf
        %v1044 = vsel %vm1036, %v1000, -inf
        %v1045 = vsel %vm1037, %v1001, -inf
        %v1046 = vsel %vm1038, %v1002, -inf
        %v1047 = vsel %vm1039, %v1003, -inf
        %v1048 = vsel %vm1040, %v1004, -inf
        %v1049 = vsel %vm1041, %v1005, -inf
        %v1050 = vsel %vm1006, %v1042, -inf
        %v1051 = vsel %vm1006, %v1043, -inf
        %v1052 = vsel %vm1006, %v1044, -inf
        %v1053 = vsel %vm1006, %v1045, -inf
        %v1054 = vsel %vm1006, %v1046, -inf
        %v1055 = vmax.f32 %v1050, %v1054
        %v1056 = vsel %vm1006, %v1047, -inf
        %v1057 = vmax.f32 %v1051, %v1056
        %v1058 = vsel %vm1006, %v1048, -inf
        %v1059 = vmax.f32 %v1052, %v1058
        %v1060 = vsel %vm1006, %v1049, -inf
        %v1061 = vmax.f32 %v1053, %v1060
        %v1062 = vmax.f32 %v1055, %v1057
        %v1063 = vmax.f32 %v1059, %v1061
        %v1064 = vmax.f32 %v1062, %v1063
        %1065 = vmax.xlane.f32.xlu0 %v1064
        %v1066 = vpop.xlane.xlu0 %1065
        %v1067 = vrot.slane %v1066, 4
        %v1068 = vmax.f32 %v1066, %v1067
        %v1069 = vrot.slane %v1068, 2
        %v1070 = vmax.f32 %v1068, %v1069
        %v1071 = vrot.slane %v1070, 1
        %v1072 = vmax.f32 %v1070, %v1071
        %s1073 = vtos %v1072
        %v1074 = vstv %s1073
        %1075 = vst [vmem:[%s210] sm:$0xff] %v1074
        %s1076 = sand.u32 %s70, 1
        %s1077 = sand.u32 %s70, 1
        %s1078 = smul.addr %s1077, 64
        %s1079 = scalar_lea.vmem [#allocation2], %s1078
        %p1080 = scmp.lt.s32.totalorder %s15, 1
        %s1081 = scalar_select %p1080, %s15, 1
        %s1082 = smul.addr %s1081, 8
        %s1083 = scalar_lea.vmem %s3, %s1082
        // Predicated region
        $region29: #{mel_filter_bank_forward.1} parent=27 // pred_check
          %p1084 = pneg %p80
        $region30: #{mel_filter_bank_forward.1} parent=27 // pred_check_branch
          %1086 = sbr.rel (%p1084) target = $region32
        $region31: #{mel_filter_bank_forward.1} parent=27 // pred_region
          %s1087 = smul.u32 8, %s15
          %s1088 = ssub.s32 15, %s1087
          %p1089 = scmp.lt.s32.totalorder %s1088, 8
          %s1090 = scalar_select %p1089, %s1088, 8
          %s1091 = smul.u32 128, %s1090
          %p1092 = scmp.ne.s32.totalorder 0, %s1091
          %s1093 = smul.addr %s1087, 8
          %s1094 = scalar_lea.vmem %s2, %s1093
          // Predicated region
          $region33: #{mel_filter_bank_forward.1} parent=31 // pred_check
            %p1095 = pneg %p1092
          $region34: #{mel_filter_bank_forward.1} parent=31 // pred_check_branch
            %1097 = sbr.rel (%p1095) target = $region36
          $region35: #{mel_filter_bank_forward.1} parent=31 // pred_region
            // Predicated region
            $region37: #{mel_filter_bank_forward.1} parent=35 // pred_check
              _
            $region38: #{mel_filter_bank_forward.1} parent=35 // pred_check_branch
              %1099 = sbr.rel (0) target = $region40
            $region39: #{mel_filter_bank_forward.1} parent=35 // pred_region
              // Predicated region
              $region59: #{mel_filter_bank_forward.1} parent=39 // pred_check
                _
              $region60: #{mel_filter_bank_forward.1} parent=39 // pred_check_branch
                %1162 = sbr.rel (0) target = $region62
              $region61: #{mel_filter_bank_forward.1} parent=39 // pred_region
                %s1163 = sshrl.u32 %s1090, 3
                // While loop
                $region63: #{mel_filter_bank_forward.1} parent=61 // loop_pre_header
                  _
                $region64: #{mel_filter_bank_forward.1} parent=61 // loop_header
                  %s1165 = sphi 0, %s1167
                  %p1166 = scmp.ge.s32.totalorder %s1165, %s1163
                  %s1170 = sphi 0, %s1191
                  %s1171 = sphi %s1079, %s1194
                  %s1172 = sphi %s1094, %s1195
                $region65: #{mel_filter_bank_forward.1} parent=61 // loop_header_branch
                  %1169 = sbr.rel (%p1166) target = $region69
                $region66: #{mel_filter_bank_forward.1} parent=61 // loop_body
                  %v1173 = vld [vmem:[%s1171] sm:$0xff]
                  %1174 = vst [vmem:[%s1172] sm:$0xff] %v1173
                  %v1175 = vld [vmem:[%s1171 + $0x8] sm:$0xff]
                  %1176 = vst [vmem:[%s1172 + $0x8] sm:$0xff] %v1175
                  %v1177 = vld [vmem:[%s1171 + $0x10] sm:$0xff]
                  %1178 = vst [vmem:[%s1172 + $0x10] sm:$0xff] %v1177
                  %v1179 = vld [vmem:[%s1171 + $0x18] sm:$0xff]
                  %1180 = vst [vmem:[%s1172 + $0x18] sm:$0xff] %v1179
                  %v1181 = vld [vmem:[%s1171 + $0x20] sm:$0xff]
                  %1182 = vst [vmem:[%s1172 + $0x20] sm:$0xff] %v1181
                  %v1183 = vld [vmem:[%s1171 + $0x28] sm:$0xff]
                  %1184 = vst [vmem:[%s1172 + $0x28] sm:$0xff] %v1183
                  %v1185 = vld [vmem:[%s1171 + $0x30] sm:$0xff]
                  %1186 = vst [vmem:[%s1172 + $0x30] sm:$0xff] %v1185
                  %v1187 = vld [vmem:[%s1171 + $0x38] sm:$0xff]
                  %1188 = vst [vmem:[%s1172 + $0x38] sm:$0xff] %v1187
                  %s1189 = sadd.s32 1, %s1170
                  %p1190 = scmp.ge.s32.totalorder %s1189, %s1163
                  %s1191 = scalar_select %p1190, 0, %s1189
                  %s1192 = smul.u32 %s1191, 64
                  %s1193 = smul.u32 %s1191, 64
                  %s1194 = scalar_lea.vmem %s1079, %s1192 [#allocation2]
                  %s1195 = scalar_lea.vmem %s1094, %s1193
                $region67: #{mel_filter_bank_forward.1} parent=61 // loop_footer
                  %s1167 = sadd.s32 %s1165, 1
                $region68: #{mel_filter_bank_forward.1} parent=61 // loop_footer_branch
                  %1164 = sbr.rel target = $region64
                $region69: #{mel_filter_bank_forward.1} parent=61 // loop_exit
                  _
                %s1196 = sshrl.u32 %s1090, 3
                %s1197 = sand.u32 %s1090, 7
                %s1198 = smul.u32 %s1196, 8
                %s1199 = smul.u32 8, %s1198
                %s1200 = scalar_lea.vmem %s1079, %s1199 [#allocation2]
                %s1201 = smul.u32 8, %s1198
                %s1202 = scalar_lea.vmem %s1094, %s1201
                // While loop
                $region70: #{mel_filter_bank_forward.1} parent=61 // loop_pre_header
                  _
                $region71: #{mel_filter_bank_forward.1} parent=61 // loop_header
                  %s1204 = sphi 0, %s1206
                  %p1205 = scmp.ge.s32.totalorder %s1204, %s1197
                  %s1209 = sphi 0, %s1216
                  %s1210 = sphi %s1200, %s1219
                  %s1211 = sphi %s1202, %s1220
                $region72: #{mel_filter_bank_forward.1} parent=61 // loop_header_branch
                  %1208 = sbr.rel (%p1205) target = $region76
                $region73: #{mel_filter_bank_forward.1} parent=61 // loop_body
                  %v1212 = vld [vmem:[%s1210] sm:$0xff]
                  %1213 = vst [vmem:[%s1211] sm:$0xff] %v1212
                  %s1214 = sadd.s32 1, %s1209
                  %p1215 = scmp.ge.s32.totalorder %s1214, %s1197
                  %s1216 = scalar_select %p1215, 0, %s1214
                  %s1217 = smul.u32 %s1216, 8
                  %s1218 = smul.u32 %s1216, 8
                  %s1219 = scalar_lea.vmem %s1200, %s1217 [#allocation2]
                  %s1220 = scalar_lea.vmem %s1202, %s1218
                $region74: #{mel_filter_bank_forward.1} parent=61 // loop_footer
                  %s1206 = sadd.s32 %s1204, 1
                $region75: #{mel_filter_bank_forward.1} parent=61 // loop_footer_branch
                  %1203 = sbr.rel target = $region71
                $region76: #{mel_filter_bank_forward.1} parent=61 // loop_exit
                  _
              $region62: #{mel_filter_bank_forward.1} parent=39 // pred_fallthru
                _
              // Predicated region
              $region77: #{mel_filter_bank_forward.1} parent=39 // pred_check
                _
              $region78: #{mel_filter_bank_forward.1} parent=39 // pred_check_branch
                %1222 = sbr.rel target = $region80
              $region79: #{mel_filter_bank_forward.1} parent=39 // pred_region
                _
              $region80: #{mel_filter_bank_forward.1} parent=39 // pred_fallthru
                _
            $region40: #{mel_filter_bank_forward.1} parent=35 // pred_fallthru
              _
            // Predicated region
            $region41: #{mel_filter_bank_forward.1} parent=35 // pred_check
              _
            $region42: #{mel_filter_bank_forward.1} parent=35 // pred_check_branch
              %1101 = sbr.rel target = $region44
            $region43: #{mel_filter_bank_forward.1} parent=35 // pred_region
              %s1103 = sshrl.u32 %s1090, 3
              // While loop
              $region45: #{mel_filter_bank_forward.1} parent=43 // loop_pre_header
                _
              $region46: #{mel_filter_bank_forward.1} parent=43 // loop_header
                %s1105 = sphi 0, %s1107
                %p1106 = scmp.ge.s32.totalorder %s1105, %s1103
                %s1110 = sphi 0, %s1131
                %s1111 = sphi %s1079, %s1134
                %s1112 = sphi %s1094, %s1135
              $region47: #{mel_filter_bank_forward.1} parent=43 // loop_header_branch
                %1109 = sbr.rel (%p1106) target = $region51
              $region48: #{mel_filter_bank_forward.1} parent=43 // loop_body
                %v1113 = vld [vmem:[%s1111] sm:$0xff]
                %1114 = vst [vmem:[%s1112] sm:$0xff] %v1113
                %v1115 = vld [vmem:[%s1111 + $0x8] sm:$0xff]
                %1116 = vst [vmem:[%s1112 + $0x8] sm:$0xff] %v1115
                %v1117 = vld [vmem:[%s1111 + $0x10] sm:$0xff]
                %1118 = vst [vmem:[%s1112 + $0x10] sm:$0xff] %v1117
                %v1119 = vld [vmem:[%s1111 + $0x18] sm:$0xff]
                %1120 = vst [vmem:[%s1112 + $0x18] sm:$0xff] %v1119
                %v1121 = vld [vmem:[%s1111 + $0x20] sm:$0xff]
                %1122 = vst [vmem:[%s1112 + $0x20] sm:$0xff] %v1121
                %v1123 = vld [vmem:[%s1111 + $0x28] sm:$0xff]
                %1124 = vst [vmem:[%s1112 + $0x28] sm:$0xff] %v1123
                %v1125 = vld [vmem:[%s1111 + $0x30] sm:$0xff]
                %1126 = vst [vmem:[%s1112 + $0x30] sm:$0xff] %v1125
                %v1127 = vld [vmem:[%s1111 + $0x38] sm:$0xff]
                %1128 = vst [vmem:[%s1112 + $0x38] sm:$0xff] %v1127
                %s1129 = sadd.s32 1, %s1110
                %p1130 = scmp.ge.s32.totalorder %s1129, %s1103
                %s1131 = scalar_select %p1130, 0, %s1129
                %s1132 = smul.u32 %s1131, 64
                %s1133 = smul.u32 %s1131, 64
                %s1134 = scalar_lea.vmem %s1079, %s1132 [#allocation2]
                %s1135 = scalar_lea.vmem %s1094, %s1133
              $region49: #{mel_filter_bank_forward.1} parent=43 // loop_footer
                %s1107 = sadd.s32 %s1105, 1
              $region50: #{mel_filter_bank_forward.1} parent=43 // loop_footer_branch
                %1104 = sbr.rel target = $region46
              $region51: #{mel_filter_bank_forward.1} parent=43 // loop_exit
                _
              %s1136 = sshrl.u32 %s1090, 3
              %s1137 = sand.u32 %s1090, 7
              %s1138 = smul.u32 %s1136, 8
              %s1139 = smul.u32 8, %s1138
              %s1140 = scalar_lea.vmem %s1079, %s1139 [#allocation2]
              %s1141 = smul.u32 8, %s1138
              %s1142 = scalar_lea.vmem %s1094, %s1141
              // While loop
              $region52: #{mel_filter_bank_forward.1} parent=43 // loop_pre_header
                _
              $region53: #{mel_filter_bank_forward.1} parent=43 // loop_header
                %s1144 = sphi 0, %s1146
                %p1145 = scmp.ge.s32.totalorder %s1144, %s1137
                %s1149 = sphi 0, %s1156
                %s1150 = sphi %s1140, %s1159
                %s1151 = sphi %s1142, %s1160
              $region54: #{mel_filter_bank_forward.1} parent=43 // loop_header_branch
                %1148 = sbr.rel (%p1145) target = $region58
              $region55: #{mel_filter_bank_forward.1} parent=43 // loop_body
                %v1152 = vld [vmem:[%s1150] sm:$0xff]
                %1153 = vst [vmem:[%s1151] sm:$0xff] %v1152
                %s1154 = sadd.s32 1, %s1149
                %p1155 = scmp.ge.s32.totalorder %s1154, %s1137
                %s1156 = scalar_select %p1155, 0, %s1154
                %s1157 = smul.u32 %s1156, 8
                %s1158 = smul.u32 %s1156, 8
                %s1159 = scalar_lea.vmem %s1140, %s1157 [#allocation2]
                %s1160 = scalar_lea.vmem %s1142, %s1158
              $region56: #{mel_filter_bank_forward.1} parent=43 // loop_footer
                %s1146 = sadd.s32 %s1144, 1
              $region57: #{mel_filter_bank_forward.1} parent=43 // loop_footer_branch
                %1143 = sbr.rel target = $region53
              $region58: #{mel_filter_bank_forward.1} parent=43 // loop_exit
                _
            $region44: #{mel_filter_bank_forward.1} parent=35 // pred_fallthru
              _
          $region36: #{mel_filter_bank_forward.1} parent=31 // pred_fallthru
            _
          %1223 = vnop
        $region32: #{mel_filter_bank_forward.1} parent=27 // pred_fallthru
          _
        // Predicated region
        $region81: #{mel_filter_bank_forward.1} parent=27 // pred_check
          %p1224 = pneg %p106
        $region82: #{mel_filter_bank_forward.1} parent=27 // pred_check_branch
          %1226 = sbr.rel (%p1224) target = $region84
        $region83: #{mel_filter_bank_forward.1} parent=27 // pred_region
          _
        $region84: #{mel_filter_bank_forward.1} parent=27 // pred_fallthru
          _
      $region28: #{mel_filter_bank_forward.1} parent=5 // pred_fallthru
        _
      %p1227 = scmp.le.s32.totalorder 2, %s10
      // Predicated region
      $region85: #{mel_filter_bank_forward.1} parent=5 // pred_check
        %p1228 = pneg %p1227
      $region86: #{mel_filter_bank_forward.1} parent=5 // pred_check_branch
        %1230 = sbr.rel (%p1228) target = $region88
      $region87: #{mel_filter_bank_forward.1} parent=5 // pred_region
        %s1231 = ssub.s32 %s10, 2
        // Predicated region
        $region89: #{mel_filter_bank_forward.1} parent=87 // pred_check
          %p1232 = pneg %p86
        $region90: #{mel_filter_bank_forward.1} parent=87 // pred_check_branch
          %1234 = sbr.rel (%p1232) target = $region92
        $region91: #{mel_filter_bank_forward.1} parent=87 // pred_region
          %s1235 = sand.u32 %s71, 1
          %s1236 = sand.u32 %s71, 1
          %s1237 = smul.addr %s1236, 64
          %s1238 = scalar_lea.vmem [#allocation2], %s1237
        $region92: #{mel_filter_bank_forward.1} parent=87 // pred_fallthru
          _
        // Predicated region
        $region93: #{mel_filter_bank_forward.1} parent=87 // pred_check
          %p1239 = pneg %p112
        $region94: #{mel_filter_bank_forward.1} parent=87 // pred_check_branch
          %1241 = sbr.rel (%p1239) target = $region96
        $region95: #{mel_filter_bank_forward.1} parent=87 // pred_region
          %p1242 = scmp.lt.s32.totalorder %s16, 1
          %s1243 = scalar_select %p1242, %s16, 1
          %s1244 = smul.addr %s1243, 8
          %s1245 = scalar_lea.vmem %s3, %s1244
        $region96: #{mel_filter_bank_forward.1} parent=87 // pred_fallthru
          _
      $region88: #{mel_filter_bank_forward.1} parent=5 // pred_fallthru
        _
    $region6: #{mel_filter_bank_forward.1} parent=1 // loop_footer
      %s14 = sadd.s32 1, %s10
    $region7: #{mel_filter_bank_forward.1} parent=1 // loop_footer_branch
      %9 = sbr.rel target = $region3
    $region8: #{mel_filter_bank_forward.1} parent=1 // loop_exit
      _

</llo_original>
